<compile_context>
chip_gen: v5e
topology: v5e:2x2
jax: 0.10.0
libtpu: 0.0.40
codegen_flags: <defaults>
</compile_context>

<pallas_src>
import functools

import jax
import jax.numpy as jnp
from jax import lax
from jax.experimental import pallas as pl
from jax.experimental.pallas import tpu as pltpu

_LANES = 128
_ACC_ROWS = 8            # (8, 128) sublane-group partials per quantity
_NUM_Q = 3               # intersection, pred.sum, target.sum
_OUT_ROWS = _NUM_Q * _ACC_ROWS
_CHUNK_ROWS = 1024       # rows per inner sub-chunk (bounds temporaries)


def _device_kind():
    try:
        return jax.devices()[0].device_kind.lower()
    except Exception:
        return ""


def _dice_kernel(x_ref, t_ref, o_ref, *, bm, bpc, num_blocks, chunk,
                 edge_valid_rows, clamp, partial_edge):
    """Accumulate per-lane sublane-group partials of sig(x)*t, sig(x), t."""
    c = pl.program_id(0)          # partial / core index ("parallel")
    j = pl.program_id(1)          # streaming reduction step ("arbitrary")
    blk = c * bpc + j             # unclamped logical block index

    @pl.when(j == 0)
    def _():
        o_ref[...] = jnp.zeros_like(o_ref)

    def accum_chunk(r0, nrows, masked, vstop):
        x = x_ref[pl.ds(r0, nrows), :].astype(jnp.float32)
        t = t_ref[pl.ds(r0, nrows), :].astype(jnp.float32)
        # EUP-native sigmoid: one tanh push per vreg (no generic divide).
        pred = 0.5 * jnp.tanh(0.5 * x) + 0.5
        if masked:
            # Only the single partial edge block pays for this path.
            ridx = lax.broadcasted_iota(jnp.int32, (nrows, _LANES), 0) + r0
            valid = ridx < vstop
            pred = jnp.where(valid, pred, 0.0)
            t = jnp.where(valid, t, 0.0)
        if nrows % _ACC_ROWS == 0:
            g = nrows // _ACC_ROWS
            fi = (pred * t).reshape(g, _ACC_ROWS, _LANES).sum(axis=0)
            fp = pred.reshape(g, _ACC_ROWS, _LANES).sum(axis=0)
            ft = t.reshape(g, _ACC_ROWS, _LANES).sum(axis=0)
            o_ref[pl.ds(0, _ACC_ROWS), :] += fi
            o_ref[pl.ds(_ACC_ROWS, _ACC_ROWS), :] += fp
            o_ref[pl.ds(2 * _ACC_ROWS, _ACC_ROWS), :] += ft
        else:
            # Tiny (<8 rows of slack) remainder: single sublane reduce.
            o_ref[pl.ds(0, 1), :] += jnp.sum(pred * t, axis=0, keepdims=True)
            o_ref[pl.ds(_ACC_ROWS, 1), :] += jnp.sum(pred, axis=0,
                                                     keepdims=True)
            o_ref[pl.ds(2 * _ACC_ROWS, 1), :] += jnp.sum(t, axis=0,
                                                         keepdims=True)

    def accumulate(masked, vstop):
        n_chunks = bm // chunk
        rem = bm % chunk
        if n_chunks > 0:
            def body(ci, carry):
                r0 = ci * chunk
                if chunk % 8 == 0:
                    r0 = pl.multiple_of(r0, 8)
                accum_chunk(r0, chunk, masked, vstop)
                return carry
            lax.fori_loop(0, n_chunks, body, 0, unroll=True)
        if rem:
            accum_chunk(n_chunks * chunk, rem, masked, vstop)

    if not clamp and not partial_edge:
        accumulate(masked=False, vstop=bm)
    else:
        conds = []
        if clamp:
            conds.append(blk < num_blocks)           # skip clamped duplicates
        if partial_edge:
            conds.append(blk != num_blocks - 1)      # edge block goes masked
        cond_plain = conds[0] if len(conds) == 1 else jnp.logical_and(*conds)

        @pl.when(cond_plain)
        def _():
            accumulate(masked=False, vstop=bm)

        if partial_edge:
            @pl.when(blk == num_blocks - 1)
            def _():
                accumulate(masked=True, vstop=edge_valid_rows)


def dice_loss_pallas(pred, target, p=0.9, block_rows=None, num_partials=None):
    """Pallas implementation of dice_loss.forward(pred, target)."""
    x = pred.reshape(-1)
    t = target.reshape(-1)
    n = x.shape[0]

    kind = _device_kind()
    if block_rows is None:
        # v7x has 64 MiB VMEM/TC -> smaller blocks; v5e/v6e have 128 MiB.
        block_rows = 8192 if "v7" in kind else 16384
    if num_partials is None:
        # 2 partials only where there are 2 TensorCores per chip.
        multi_tc = ("v7" in kind) or ("v4" in kind) or ("v5p" in kind)
        num_partials = 2 if multi_tc else 1

    rows = n // _LANES
    n_main = rows * _LANES
    tail = n - n_main

    # Ragged tail (<128 elements): tiny pure-JAX reduction; no full-array pad.
    if tail:
        xt = x[n_main:].astype(jnp.float32)
        tt = t[n_main:].astype(jnp.float32)
        pt = jax.nn.sigmoid(xt)
        inter_t = jnp.sum(pt * tt)
        ps_t = jnp.sum(pt)
        ts_t = jnp.sum(tt)
    else:
        inter_t = ps_t = ts_t = jnp.float32(0.0)

    if rows == 0:
        inter, ps, ts = inter_t, ps_t, ts_t
    else:
        xm = (x[:n_main] if tail else x).reshape(rows, _LANES)
        tm = (t[:n_main] if tail else t).reshape(rows, _LANES)

        # Sublane alignment for the most-packed streamed dtype
        # (8 rows for f32, 16 for bf16, 32 for int8).
        min_item = min(jnp.dtype(xm.dtype).itemsize,
                       jnp.dtype(tm.dtype).itemsize)
        sub_align = 8 * max(1, 4 // max(1, min_item))

        if rows <= block_rows:
            bm = rows                              # single block == full extent
        else:
            bm = max(sub_align, (block_rows // sub_align) * sub_align)

        num_blocks = pl.cdiv(rows, bm)
        num_partials = max(1, min(num_partials, num_blocks))
        bpc = pl.cdiv(num_blocks, num_partials)    # blocks per core
        total_blocks = bpc * num_partials
        clamp = total_blocks > num_blocks          # duplicate clamped block(s)
        partial_edge = (num_blocks * bm) != rows   # partial last block
        edge_valid_rows = rows - (num_blocks - 1) * bm
        chunk = min(_CHUNK_ROWS, bm)

        def in_map(c, j):
            blk = c * bpc + j
            if clamp:
                blk = jnp.minimum(blk, num_blocks - 1)   # keep DMA in-bounds
            return (blk, 0)

        kernel = functools.partial(
            _dice_kernel, bm=bm, bpc=bpc, num_blocks=num_blocks, chunk=chunk,
            edge_valid_rows=edge_valid_rows, clamp=clamp,
            partial_edge=partial_edge)

        item_bytes = (jnp.dtype(xm.dtype).itemsize
                      + jnp.dtype(tm.dtype).itemsize)
        pipelined = 2 * bm * _LANES * item_bytes       # 2 bufs x 2 inputs
        vmem_cap = (48 * 2**20) if "v7" in kind else (100 * 2**20)
        vmem_limit = int(min(vmem_cap,
                             max(32 * 2**20, pipelined + 8 * 2**20)))

        cost = pl.CostEstimate(
            flops=6 * n_main,
            transcendentals=n_main,
            bytes_accessed=n_main * item_bytes
            + num_partials * _OUT_ROWS * _LANES * 4)

        partials = pl.pallas_call(
            kernel,
            out_shape=jax.ShapeDtypeStruct(
                (num_partials * _OUT_ROWS, _LANES), jnp.float32),
            grid_spec=pltpu.PrefetchScalarGridSpec(
                num_scalar_prefetch=0,
                grid=(num_partials, bpc),
                in_specs=[
                    pl.BlockSpec((bm, _LANES), in_map),
                    pl.BlockSpec((bm, _LANES), in_map),
                ],
                out_specs=pl.BlockSpec((_OUT_ROWS, _LANES),
                                       lambda c, j: (c, 0)),
            ),
            compiler_params=pltpu.CompilerParams(
                dimension_semantics=("parallel", "arbitrary"),
                vmem_limit_bytes=vmem_limit,
            ),
            cost_estimate=cost,
        )(xm, tm)

        # Tiny final reduction on (partials, 3, 8, 128).
        partials = partials.reshape(num_partials, _NUM_Q, _ACC_ROWS, _LANES)
        inter = partials[:, 0].sum() + inter_t
        ps = partials[:, 1].sum() + ps_t
        ts = partials[:, 2].sum() + ts_t

    dice_coef = (2.0 * inter + p) / (ps + ts + p)
    return 1.0 - dice_coef


def dice_loss_ref(pred, target, p=0.9):
    """Pure-JAX reference matching the PyTorch module."""
    pred = jax.nn.sigmoid(pred).reshape(-1)
    target = target.reshape(-1)
    intersection = jnp.sum(pred * target)
    dice_coef = (2.0 * intersection + p) / (jnp.sum(pred) + jnp.sum(target) + p)
    return 1.0 - dice_coef


if __name__ == "__main__":
    key = jax.random.PRNGKey(0)
    k1, k2, k3, k4, k5, k6, k7, k8 = jax.random.split(key, 8)

    # 1) Segmentation-style input: (N, C, H, W) = (2, 4, 16, 16).
    pred1 = jax.random.normal(k1, (2, 4, 16, 16), dtype=jnp.float32)
    tgt1 = (jax.random.uniform(k2, (2, 4, 16, 16)) > 0.5).astype(jnp.float32)
    out1 = jax.block_until_ready(dice_loss_pallas(pred1, tgt1, p=0.9))
    ref1 = jax.block_until_ready(dice_loss_ref(pred1, tgt1, p=0.9))
    assert jnp.allclose(out1, ref1, rtol=1e-4, atol=1e-5), (out1, ref1)

    # 2) Ragged element count (945 = 7*128 + 49): wrapper tail path, no pad.
    pred2 = jax.random.normal(k3, (3, 5, 7, 9), dtype=jnp.float32)
    tgt2 = (jax.random.uniform(k4, (3, 5, 7, 9)) > 0.5).astype(jnp.float32)
    out2 = jax.block_until_ready(dice_loss_pallas(pred2, tgt2, p=0.9))
    ref2 = jax.block_until_ready(dice_loss_ref(pred2, tgt2, p=0.9))
    assert jnp.allclose(out2, ref2, rtol=1e-4, atol=1e-5), (out2, ref2)

    # 3) Multi-block streaming with a partial edge block, 2 partials and a
    #    clamped duplicate block (exercises every kernel path).
    pred3 = jax.random.normal(k5, (4, 8, 64, 128), dtype=jnp.float32)
    tgt3 = (jax.random.uniform(k6, (4, 8, 64, 128)) > 0.5).astype(jnp.float32)
    out3 = jax.block_until_ready(
        dice_loss_pallas(pred3, tgt3, p=1.0, block_rows=768, num_partials=2))
    ref3 = jax.block_until_ready(dice_loss_ref(pred3, tgt3, p=1.0))
    assert jnp.allclose(out3, ref3, rtol=1e-4, atol=1e-5), (out3, ref3)

    # 4) Narrow-dtype inputs streamed without wrapper upcast (bf16 path).
    pred4 = jax.random.normal(k7, (2, 4, 64, 128), dtype=jnp.float32)
    tgt4 = (jax.random.uniform(k8, (2, 4, 64, 128)) > 0.5)
    pred4_bf16 = pred4.astype(jnp.bfloat16)
    tgt4_bf16 = tgt4.astype(jnp.bfloat16)
    out4 = jax.block_until_ready(
        dice_loss_pallas(pred4_bf16, tgt4_bf16, p=0.9, block_rows=128))
    ref4 = jax.block_until_ready(
        dice_loss_ref(pred4_bf16.astype(jnp.float32),
                      tgt4_bf16.astype(jnp.float32), p=0.9))
    assert jnp.allclose(out4, ref4, rtol=1e-4, atol=1e-5), (out4, ref4)

    print("KERNEL_OK")
</pallas_src>

<mosaic_0001>
module attributes {stable_mosaic.version = 11 : i64} {
  func.func @_dice_kernel(%arg0: i32, %arg1: i32, %arg2: memref<16x128xf32, #tpu.memory_space<vmem>>, %arg3: memref<16x128xf32, #tpu.memory_space<vmem>>, %arg4: memref<24x128xf32, #tpu.memory_space<vmem>>) attributes {dimension_semantics = [#tpu.dimension_semantics<parallel>, #tpu.dimension_semantics<arbitrary>], iteration_bounds = array<i64: 1, 1>, scalar_prefetch = 0 : i64, scratch_operands = 0 : i64, tpu.core_type = #tpu.core_type<tc>, window_params = [{transform_indices = @transform_0, window_bounds = array<i64: 16, 128>}, {transform_indices = @transform_1, window_bounds = array<i64: 16, 128>}, {transform_indices = @transform_2, window_bounds = array<i64: 24, 128>}]} {
    %c0_i32 = arith.constant 0 : i32
    %0 = arith.cmpi eq, %arg1, %c0_i32 : i32
    %1 = arith.extui %0 : i1 to i32
    %c0_i32_0 = arith.constant 0 : i32
    %2 = arith.cmpi ne, %1, %c0_i32_0 : i32
    scf.if %2 {
      %cst_18 = arith.constant 0.000000e+00 : f32
      %32 = vector.broadcast %cst_18 : f32 to vector<24x128xf32>
      %c0_19 = arith.constant 0 : index
      %c0_20 = arith.constant 0 : index
      %33 = vector.load %arg4[%c0_19, %c0_20] : memref<24x128xf32, #tpu.memory_space<vmem>>, vector<24x128xf32>
      tpu.vector_store %arg4[%c0_19, %c0_20], %32 {strides = array<i32>} : memref<24x128xf32, #tpu.memory_space<vmem>>, vector<24x128xf32>,
    } else {
    }
    %c0_i32_1 = arith.constant 0 : i32
    %c16_i32 = arith.constant 16 : i32
    %3 = arith.muli %c0_i32_1, %c16_i32 : i32
    %4 = tpu.assume_multiple %3, 8 : i32
    %5 = arith.index_cast %4 : i32 to index
    %c0 = arith.constant 0 : index
    %6 = vector.load %arg2[%5, %c0] : memref<16x128xf32, #tpu.memory_space<vmem>>, vector<16x128xf32>
    %7 = arith.index_cast %4 : i32 to index
    %c0_2 = arith.constant 0 : index
    %8 = vector.load %arg3[%7, %c0_2] : memref<16x128xf32, #tpu.memory_space<vmem>>, vector<16x128xf32>
    %cst = arith.constant 5.000000e-01 : f32
    %9 = vector.broadcast %cst : f32 to vector<16x128xf32>
    %10 = arith.mulf %9, %6 : vector<16x128xf32>
    %11 = math.tanh %10 : vector<16x128xf32>
    %cst_3 = arith.constant 5.000000e-01 : f32
    %12 = vector.broadcast %cst_3 : f32 to vector<16x128xf32>
    %13 = arith.mulf %12, %11 : vector<16x128xf32>
    %cst_4 = arith.constant 5.000000e-01 : f32
    %14 = vector.broadcast %cst_4 : f32 to vector<16x128xf32>
    %15 = arith.addf %13, %14 : vector<16x128xf32>
    %16 = arith.mulf %15, %8 : vector<16x128xf32>
    %17 = vector.shape_cast %16 : vector<16x128xf32> to vector<2x8x128xf32>
    %cst_5 = arith.constant dense<0.000000e+00> : vector<8x128xf32>
    %18 = vector.multi_reduction <add>, %17, %cst_5 [0] : vector<2x8x128xf32> to vector<8x128xf32>
    %19 = vector.shape_cast %15 : vector<16x128xf32> to vector<2x8x128xf32>
    %cst_6 = arith.constant dense<0.000000e+00> : vector<8x128xf32>
    %20 = vector.multi_reduction <add>, %19, %cst_6 [0] : vector<2x8x128xf32> to vector<8x128xf32>
    %21 = vector.shape_cast %8 : vector<16x128xf32> to vector<2x8x128xf32>
    %cst_7 = arith.constant dense<0.000000e+00> : vector<8x128xf32>
    %22 = vector.multi_reduction <add>, %21, %cst_7 [0] : vector<2x8x128xf32> to vector<8x128xf32>
    %c0_8 = arith.constant 0 : index
    %c0_9 = arith.constant 0 : index
    %23 = vector.load %arg4[%c0_8, %c0_9] : memref<24x128xf32, #tpu.memory_space<vmem>>, vector<8x128xf32>
    %24 = arith.addf %23, %18 : vector<8x128xf32>
    %c0_10 = arith.constant 0 : index
    %c0_11 = arith.constant 0 : index
    %25 = vector.load %arg4[%c0_10, %c0_11] : memref<24x128xf32, #tpu.memory_space<vmem>>, vector<8x128xf32>
    tpu.vector_store %arg4[%c0_10, %c0_11], %24 {strides = array<i32>} : memref<24x128xf32, #tpu.memory_space<vmem>>, vector<8x128xf32>,
    %c8 = arith.constant 8 : index
    %c0_12 = arith.constant 0 : index
    %26 = vector.load %arg4[%c8, %c0_12] : memref<24x128xf32, #tpu.memory_space<vmem>>, vector<8x128xf32>
    %27 = arith.addf %26, %20 : vector<8x128xf32>
    %c8_13 = arith.constant 8 : index
    %c0_14 = arith.constant 0 : index
    %28 = vector.load %arg4[%c8_13, %c0_14] : memref<24x128xf32, #tpu.memory_space<vmem>>, vector<8x128xf32>
    tpu.vector_store %arg4[%c8_13, %c0_14], %27 {strides = array<i32>} : memref<24x128xf32, #tpu.memory_space<vmem>>, vector<8x128xf32>,
    %c16 = arith.constant 16 : index
    %c0_15 = arith.constant 0 : index
    %29 = vector.load %arg4[%c16, %c0_15] : memref<24x128xf32, #tpu.memory_space<vmem>>, vector<8x128xf32>
    %30 = arith.addf %29, %22 : vector<8x128xf32>
    %c16_16 = arith.constant 16 : index
    %c0_17 = arith.constant 0 : index
    %31 = vector.load %arg4[%c16_16, %c0_17] : memref<24x128xf32, #tpu.memory_space<vmem>>, vector<8x128xf32>
    tpu.vector_store %arg4[%c16_16, %c0_17], %30 {strides = array<i32>} : memref<24x128xf32, #tpu.memory_space<vmem>>, vector<8x128xf32>,
    %c1_i32 = arith.constant 1 : i32
    return
  }
  func.func @transform_0(%arg0: i32, %arg1: i32) -> (i32, i32) {
    %c1_i32 = arith.constant 1 : i32
    %0 = arith.muli %arg0, %c1_i32 : i32
    %1 = arith.addi %0, %arg1 : i32
    %c0_i32 = arith.constant 0 : i32
    %c0_i32_0 = arith.constant 0 : i32
    return %1, %c0_i32 : i32, i32
  }
  func.func @transform_1(%arg0: i32, %arg1: i32) -> (i32, i32) {
    %c1_i32 = arith.constant 1 : i32
    %0 = arith.muli %arg0, %c1_i32 : i32
    %1 = arith.addi %0, %arg1 : i32
    %c0_i32 = arith.constant 0 : i32
    %c0_i32_0 = arith.constant 0 : i32
    return %1, %c0_i32 : i32, i32
  }
  func.func @transform_2(%arg0: i32, %arg1: i32) -> (i32, i32) {
    %c0_i32 = arith.constant 0 : i32
    %c0_i32_0 = arith.constant 0 : i32
    return %arg0, %c0_i32 : i32, i32
  }
}

</mosaic_0001>

<llo_original>
// kernel: tpu_custom_call.1
$region0: #{tpu_custom_call.1}
  #allocation0 [shape = 'u32[]', space=smem, size = 0x4, offset = 0x4, fixed_abs, tag = 'smem constant byte address 0x4 - core index']
  #allocation1 [shape = 'u32[72,128]{1,0:T(1,128)}', space=vmem, size = 0x9000, scoped, tag = 'internal scratch']
  %s0 = inlined_call_operand.hbm [shape: f32[16,128], index: 0, kind: input, shape index: {}]
  %s1 = inlined_call_operand.hbm [shape: f32[16,128], index: 1, kind: input, shape index: {}]
  %s2 = inlined_call_operand.hbm [shape: f32[24,128], index: 2, kind: output, shape index: {}]
  %s3 = sld [smem:[#allocation0]]
  $region30: #{tpu_custom_call.1} parent=0
    _
  %s5 = ssub.s32 1, %s3
  %s6 = scalar_select 0, %s5, %s3
  $region1: #{tpu_custom_call.1} parent=0
    #allocation2 [shape = 'u8[8192]{0}', space=vmem, size = 0x2000, scoped, tag = 'input window, operand 0, single buffered']
    #allocation3 [shape = 's32[1]{0}', space=sflag, size = 0x4, scoped, tag = 'scoped memory for tpu_custom_call.1']
    #allocation4 [shape = 's32[1]{0}', space=sflag, size = 0x4, scoped, tag = 'scoped memory for tpu_custom_call.1']
    #allocation5 [shape = 'u8[8192]{0}', space=vmem, size = 0x2000, scoped, tag = 'input window, operand 1, single buffered']
    #allocation6 [shape = 's32[1]{0}', space=sflag, size = 0x4, scoped, tag = 'scoped memory for tpu_custom_call.1']
    #allocation7 [shape = 'u8[12288]{0}', space=vmem, size = 0x3000, scoped, tag = 'output window, operand 0, single buffered']
    %7 = vsyncpa [#allocation3], 0
    %8 = vsyncpa [#allocation6], 0
    %9 = vsyncpa [#allocation4], 0
    // Predicated region
    $region2: #{tpu_custom_call.1} parent=1 // pred_check
      _
    $region3: #{tpu_custom_call.1} parent=1 // pred_check_branch
      %11 = sbr.rel (0) target = $region5
    $region4: #{tpu_custom_call.1} parent=1 // pred_region
      %s12 = sadd.s32 0, 0
      %s13 = smul.u32 2, %s12
      %15 = vsyncadd [#allocation3], 0
      %s16 = smul.addr %s13, 8
      %s17 = scalar_lea.hbm %s0, %s16
      %s18 = sshll.u32 %s17, 4
      %s19 = int_to_ptr.hbm [resolvable:$true] %s18
      %s20 = sshll.u32 [#allocation2], 4
      %s21 = int_to_ptr.vmem [resolvable:$true] %s20
      %26 = dma.hbm_to_vmem [thread:$0]  %s19, 256, %s21, [#allocation3], 128, 128, 8
    $region5: #{tpu_custom_call.1} parent=1 // pred_fallthru
      _
    // Predicated region
    $region6: #{tpu_custom_call.1} parent=1 // pred_check
      _
    $region7: #{tpu_custom_call.1} parent=1 // pred_check_branch
      %28 = sbr.rel (0) target = $region9
    $region8: #{tpu_custom_call.1} parent=1 // pred_region
      %s29 = sadd.s32 0, 0
      %s30 = smul.u32 2, %s29
      %32 = vsyncadd [#allocation6], 0
      %s33 = smul.addr %s30, 8
      %s34 = scalar_lea.hbm %s1, %s33
      %s35 = sshll.u32 %s34, 4
      %s36 = int_to_ptr.hbm [resolvable:$true] %s35
      %s37 = sshll.u32 [#allocation5], 4
      %s38 = int_to_ptr.vmem [resolvable:$true] %s37
      %43 = dma.hbm_to_vmem [thread:$0]  %s36, 256, %s38, [#allocation6], 128, 128, 8
    $region9: #{tpu_custom_call.1} parent=1 // pred_fallthru
      _
    // Predicated region
    $region10: #{tpu_custom_call.1} parent=1 // pred_check
      _
    $region11: #{tpu_custom_call.1} parent=1 // pred_check_branch
      %45 = sbr.rel (0) target = $region13
    $region12: #{tpu_custom_call.1} parent=1 // pred_region
      %47 = dma.done [#allocation3], 256
    $region13: #{tpu_custom_call.1} parent=1 // pred_fallthru
      _
    // Predicated region
    $region14: #{tpu_custom_call.1} parent=1 // pred_check
      _
    $region15: #{tpu_custom_call.1} parent=1 // pred_check_branch
      %49 = sbr.rel (0) target = $region17
    $region16: #{tpu_custom_call.1} parent=1 // pred_region
      %51 = dma.done [#allocation6], 256
    $region17: #{tpu_custom_call.1} parent=1 // pred_fallthru
      _
    %s52 = sadd.s32 0, 0
    %s53 = smul.u32 2, %s52
    %s54 = sadd.s32 0, 0
    %s55 = smul.u32 2, %s54
    %p56 = scmp.eq.s32.totalorder 0, 0
    // Predicated region
    $region18: #{tpu_custom_call.1} parent=1 // pred_check
      %p57 = pneg %p56
    $region19: #{tpu_custom_call.1} parent=1 // pred_check_branch
      %59 = sbr.rel (%p57) target = $region21
    $region20: #{tpu_custom_call.1} parent=1 // pred_region
      %60 = vst [vmem:[#allocation7] sm:$0xff] 0.0
      %61 = vst [vmem:[#allocation7 + $0x8] sm:$0xff] 0.0
      %62 = vst [vmem:[#allocation7 + $0x10] sm:$0xff] 0.0
    $region21: #{tpu_custom_call.1} parent=1 // pred_fallthru
      _
    %v63 = vld [vmem:[#allocation2] sm:$0xff]
    %v64 = vld [vmem:[#allocation2 + $0x8] sm:$0xff]
    %v65 = vld [vmem:[#allocation5] sm:$0xff]
    %v66 = vld [vmem:[#allocation5 + $0x8] sm:$0xff]
    %v67 = vmul.f32 %v63, 0.5
    %v68 = vmul.f32 %v64, 0.5
    %v69 = vtanh.pop %v67
    %v70 = vtanh.pop %v68
    %v71 = vmul.f32 %v69, 0.5
    %v72 = vmul.f32 %v70, 0.5
    %v73 = vadd.f32 %v71, 0.5
    %v74 = vadd.f32 %v72, 0.5
    %v75 = vmul.f32 %v73, %v65
    %v76 = vmul.f32 %v74, %v66
    %v77 = vadd.f32 %v75, %v76
    %v78 = vadd.f32 %v73, %v74
    %v79 = vadd.f32 %v65, %v66
    %v80 = vld [vmem:[#allocation7] sm:$0xff]
    %v81 = vadd.f32 %v80, %v77
    %82 = vst [vmem:[#allocation7] sm:$0xff] %v81
    %v83 = vld [vmem:[#allocation7 + $0x8] sm:$0xff]
    %v84 = vadd.f32 %v83, %v78
    %85 = vst [vmem:[#allocation7 + $0x8] sm:$0xff] %v84
    %v86 = vld [vmem:[#allocation7 + $0x10] sm:$0xff]
    %v87 = vadd.f32 %v86, %v79
    %88 = vst [vmem:[#allocation7 + $0x10] sm:$0xff] %v87
    // Predicated region
    $region22: #{tpu_custom_call.1} parent=1 // pred_check
      _
    $region23: #{tpu_custom_call.1} parent=1 // pred_check_branch
      %90 = sbr.rel (0) target = $region25
    $region24: #{tpu_custom_call.1} parent=1 // pred_region
      %92 = vsyncadd [#allocation4], 0
      %s93 = sshll.u32 [#allocation7], 4
      %s94 = int_to_ptr.vmem [resolvable:$true] %s93
      %s95 = sshll.u32 %s2, 4
      %s96 = int_to_ptr.hbm [resolvable:$true] %s95
      %101 = dma.vmem_to_hbm [thread:$0]  %s94, 384, %s96, [#allocation4], 128, 128, 8
    $region25: #{tpu_custom_call.1} parent=1 // pred_fallthru
      _
    // Predicated region
    $region26: #{tpu_custom_call.1} parent=1 // pred_check
      _
    $region27: #{tpu_custom_call.1} parent=1 // pred_check_branch
      %103 = sbr.rel (0) target = $region29
    $region28: #{tpu_custom_call.1} parent=1 // pred_region
      %105 = dma.done [#allocation4], 384
    $region29: #{tpu_custom_call.1} parent=1 // pred_fallthru
      _
    %106 = vsyncpa [#allocation3], 1
    %107 = vsyncpa [#allocation6], 1
    %108 = vsyncpa [#allocation4], 1

</llo_original>
